<compile_context>
chip_gen: v7x
topology: tpu7x:2x2x1
jax: 0.10.0
libtpu: 0.0.40
codegen_flags: <defaults>
</compile_context>

<pallas_src>
import functools

import jax
import jax.numpy as jnp
from jax import lax
from jax.experimental import pallas as pl
from jax.experimental.pallas import tpu as pltpu

_LANE = 128
_TARGET_BLOCK_BYTES = 4 * 1024 * 1024   # >=1 MiB blocks reach ~85% of HBM BW
_MAX_S_TILE = 32768                     # cap on streamed lane elements per tile
_MAX_NB = 256                           # cap on batch folding


def _channel_attention_kernel(x_ref, w1_ref, w2_ref, o_ref, acc_ref, *,
                              inv_s, s_total, s_tile, chunked, ragged):
    """Grid = (batch blocks, S tiles).

    Streams x, accumulates per-lane partial sums in f32, and runs the tiny
    MLP + sigmoid once in the last-S-step epilogue.
    """
    s = pl.program_id(1)

    @pl.when(s == 0)
    def _init():
        acc_ref[...] = jnp.zeros_like(acc_ref)

    if chunked:
        # Streaming path (s_tile is a multiple of 128, one batch per block).
        # Static 128-lane chunk slices -> pure VPU adds into a lane-parallel
        # accumulator; the cast to f32 happens vreg-at-a-time (no f32 copy of
        # the whole tile) and there is no per-step cross-lane reduce.
        n_chunks = s_tile // _LANE
        if ragged:
            lane = lax.broadcasted_iota(jnp.int32, (1, 1, _LANE), 2)
            base = s * s_tile
        # Two independent partials break the add dependency chain when the
        # chunk count is large (C is small there, so vregs comfortably fit).
        n_parts = 2 if n_chunks >= 64 else 1
        parts = [jnp.zeros(acc_ref.shape, jnp.float32) for _ in range(n_parts)]
        for k in range(n_chunks):
            chunk = x_ref[:, :, pl.ds(k * _LANE, _LANE)].astype(jnp.float32)
            if ragged:
                chunk = jnp.where(base + k * _LANE + lane < s_total, chunk, 0.0)
            parts[k % n_parts] = parts[k % n_parts] + chunk
        total = parts[0]
        for p in parts[1:]:
            total = total + p
        acc_ref[...] += total
    else:
        # Single full-extent S step (small, batch-folded blocks): one direct
        # reduce over the lane axis, accumulated in f32.
        acc_ref[...] += jnp.sum(x_ref[...], axis=-1, keepdims=True,
                                dtype=jnp.float32)

    @pl.when(s == pl.num_programs(1) - 1)
    def _epilogue():
        # AdaptiveAvgPool3d(1).  NOTE: the reference module uses
        # AdaptiveAvgPool3d for "max_pool" as well when dimension == 3, so
        # maxpool == avgpool here -- intentional, keep it.
        pooled = jnp.sum(acc_ref[...], axis=-1) * inv_s            # (NB, C) f32
        # 1x1x1-conv MLP on the VPU: Cr is tiny, so an (NBxC)x(CxCr) matmul
        # would badly underfill the MXU and force relayouts.
        w1 = w1_ref[...].astype(jnp.float32)                       # (Cr, C)
        w2 = w2_ref[...].astype(jnp.float32)                       # (Cr, C)
        m = jnp.zeros_like(pooled)
        for j in range(w1.shape[0]):
            hj = jnp.sum(pooled * w1[j:j + 1, :], axis=-1, keepdims=True)
            hj = jnp.maximum(hj, 0.0)                               # ReLU
            m = m + hj * w2[j:j + 1, :]                             # (NB, C)
        # mlp(avgpool) + mlp(maxpool) == m + m (bit-exact in f32).
        o_ref[...] = jax.nn.sigmoid(m + m).astype(o_ref.dtype)


def _choose_tiling(n, c, s, itemsize):
    """Returns (nb, s_tile, n_s, chunked, ragged)."""
    per_batch = c * s * itemsize
    if per_batch <= _TARGET_BLOCK_BYTES:
        # Small volumes: fold several batch items into one >=~1 MiB block so
        # the whole reduction runs in one (or a few) grid steps.
        max_nb = int(min(_TARGET_BLOCK_BYTES // max(per_batch, 1), _MAX_NB, n))
        nb = 1
        for cand in range(max(max_nb, 1), 0, -1):
            if n % cand == 0:
                nb = cand
                break
        return nb, s, 1, False, False
    # Large volumes: one batch per block, stream lane-dense ~1-4 MiB tiles.
    s_tile = _TARGET_BLOCK_BYTES // (c * itemsize)
    s_tile = max(_LANE, min(int(s_tile), _MAX_S_TILE))
    s_tile -= s_tile % _LANE
    n_s = pl.cdiv(s, s_tile)
    ragged = (s % s_tile) != 0
    return 1, s_tile, n_s, True, ragged


def channel_attention(x, w1_conv, w2_conv):
    """x: (N, C, D, H, W); w1_conv: (Cr, C, 1, 1, 1); w2_conv: (C, Cr, 1, 1, 1)."""
    N, C, D, H, W = x.shape
    Cr = w1_conv.shape[0]
    S = D * H * W

    # Free reshape (contiguous trailing dims); NO dtype cast here -- x is read
    # from HBM exactly once and cast on the VPU inside the kernel.
    x_flat = x.reshape(N, C, S)
    w1 = w1_conv.reshape(Cr, C)                    # (Cr, C): conv1 weight
    w2 = jnp.transpose(w2_conv.reshape(C, Cr))     # (Cr, C): conv2 weight^T

    nb, s_tile, n_s, chunked, ragged = _choose_tiling(N, C, S, x.dtype.itemsize)
    n_b = N // nb
    acc_lanes = _LANE if chunked else 1

    kernel = functools.partial(
        _channel_attention_kernel, inv_s=1.0 / S, s_total=S, s_tile=s_tile,
        chunked=chunked, ragged=ragged)

    cost = pl.CostEstimate(
        flops=int(N * C * S + 4 * N * C * Cr),
        transcendentals=int(N * C),
        bytes_accessed=int(x_flat.size * x_flat.dtype.itemsize
                           + (w1.size + w2.size) * w1.dtype.itemsize
                           + N * C * x.dtype.itemsize),
    )

    out = pl.pallas_call(
        kernel,
        out_shape=jax.ShapeDtypeStruct((n_b, nb, C), x.dtype),
        grid_spec=pltpu.PrefetchScalarGridSpec(
            num_scalar_prefetch=0,
            grid=(n_b, n_s),
            in_specs=[
                pl.BlockSpec((nb, C, s_tile), lambda n, s: (n, 0, s)),
                pl.BlockSpec((Cr, C), lambda n, s: (0, 0)),
                pl.BlockSpec((Cr, C), lambda n, s: (0, 0)),
            ],
            # Leading dim squeezed -> kernel sees (nb, C); trailing block dims
            # equal the full array dims, so any nb is layout-legal.
            out_specs=pl.BlockSpec((None, nb, C), lambda n, s: (n, 0, 0)),
            scratch_shapes=[pltpu.VMEM((nb, C, acc_lanes), jnp.float32)],
        ),
        compiler_params=pltpu.CompilerParams(
            dimension_semantics=("parallel", "arbitrary"),
            vmem_limit_bytes=32 * 1024 * 1024,
        ),
        cost_estimate=cost,
    )(x_flat, w1, w2)

    # Restore PyTorch output shape (N, C, 1, 1, 1).
    return out.reshape(N, C, 1, 1, 1)


def channel_attention_ref(x, w1_conv, w2_conv):
    """Pure-JAX reference mirroring the PyTorch forward (dimension=3)."""
    N, C = x.shape[:2]
    Cr = w1_conv.shape[0]
    xf = x.reshape(N, C, -1).astype(jnp.float32)
    pooled = jnp.mean(xf, axis=-1)                 # avg pool; "max" pool is also
    w1 = w1_conv.reshape(Cr, C).astype(jnp.float32)    # avg per reference dim==3
    w2 = w2_conv.reshape(C, Cr).astype(jnp.float32)

    def mlp(p):
        return jnp.maximum(p @ w1.T, 0.0) @ w2.T

    out = jax.nn.sigmoid(mlp(pooled) + mlp(pooled))
    return out.reshape(N, C, 1, 1, 1).astype(x.dtype)


def _run_case(key, shape, name):
    N, C, D, H, W = shape
    Cr = max(1, C // 16)
    kx, k1, k2 = jax.random.split(key, 3)
    x = jax.random.normal(kx, shape, dtype=jnp.float32)
    # Conv3d weight shapes (out, in, 1, 1, 1), bias=False.
    w1_conv = jax.random.normal(k1, (Cr, C, 1, 1, 1), dtype=jnp.float32) * 0.1
    w2_conv = jax.random.normal(k2, (C, Cr, 1, 1, 1), dtype=jnp.float32) * 0.1

    out = jax.block_until_ready(channel_attention(x, w1_conv, w2_conv))
    ref = channel_attention_ref(x, w1_conv, w2_conv)
    assert out.shape == (N, C, 1, 1, 1), (name, out.shape)
    err = float(jnp.max(jnp.abs(out.astype(jnp.float32) - ref.astype(jnp.float32))))
    assert err < 2e-5, (name, err)


if __name__ == "__main__":
    key = jax.random.PRNGKey(0)
    k0, k1, k2 = jax.random.split(key, 3)
    # Main config (channel=32 -> Cr=2): small volume, both batch items fold
    # into a single >=1 MiB block (one grid step instead of four 256 KiB ones).
    _run_case(k0, (2, 32, 8, 16, 32), "folded")
    # Streaming path: per-batch volume > 4 MiB -> lane-dense 32768-wide tiles
    # with the ragged last tile masked in-kernel (S = 47*53*59, not a multiple
    # of 128).
    _run_case(k1, (1, 8, 47, 53, 59), "streaming-ragged")
    # Odd tiny shape: S not a multiple of 128, batch folding with nb=3, Cr=1.
    _run_case(k2, (3, 16, 3, 5, 7), "tiny-folded")
    print("KERNEL_OK")
</pallas_src>

<mosaic_0001>
module attributes {stable_mosaic.version = 11 : i64} {
  func.func @_channel_attention_kernel(%arg0: i32, %arg1: i32, %arg2: memref<2x32x4096xf32, #tpu.memory_space<vmem>>, %arg3: memref<2x32xf32, #tpu.memory_space<vmem>>, %arg4: memref<2x32xf32, #tpu.memory_space<vmem>>, %arg5: memref<1x2x32xf32, #tpu.memory_space<vmem>>, %arg6: memref<2x32x1xf32, #tpu.memory_space<vmem>>) attributes {dimension_semantics = [#tpu.dimension_semantics<parallel>, #tpu.dimension_semantics<arbitrary>], iteration_bounds = array<i64: 1, 1>, scalar_prefetch = 0 : i64, scratch_operands = 1 : i64, tpu.core_type = #tpu.core_type<tc>, window_params = [{transform_indices = @transform_0, window_bounds = array<i64: 2, 32, 4096>}, {pipeline_mode = #tpu.pipeline_mode<synchronous>, transform_indices = @transform_1, window_bounds = array<i64: 2, 32>}, {pipeline_mode = #tpu.pipeline_mode<synchronous>, transform_indices = @transform_2, window_bounds = array<i64: 2, 32>}, {transform_indices = @transform_3, window_bounds = array<i64: 1, 2, 32>}]} {
    %c0_i32 = arith.constant 0 : i32
    %0 = arith.cmpi eq, %arg1, %c0_i32 : i32
    %1 = arith.extui %0 : i1 to i32
    %c0_i32_0 = arith.constant 0 : i32
    %2 = arith.cmpi ne, %1, %c0_i32_0 : i32
    scf.if %2 {
      %cst_11 = arith.constant 0.000000e+00 : f32
      %12 = vector.broadcast %cst_11 : f32 to vector<2x32x1xf32>
      %c0_12 = arith.constant 0 : index
      %c0_13 = arith.constant 0 : index
      %c0_14 = arith.constant 0 : index
      %13 = vector.load %arg6[%c0_12, %c0_13, %c0_14] : memref<2x32x1xf32, #tpu.memory_space<vmem>>, vector<2x32x1xf32>
      tpu.vector_store %arg6[%c0_12, %c0_13, %c0_14], %12 {strides = array<i32>} : memref<2x32x1xf32, #tpu.memory_space<vmem>>, vector<2x32x1xf32>,
    } else {
    }
    %c0 = arith.constant 0 : index
    %c0_1 = arith.constant 0 : index
    %c0_2 = arith.constant 0 : index
    %3 = vector.load %arg6[%c0, %c0_1, %c0_2] : memref<2x32x1xf32, #tpu.memory_space<vmem>>, vector<2x32x1xf32>
    %c0_3 = arith.constant 0 : index
    %c0_4 = arith.constant 0 : index
    %c0_5 = arith.constant 0 : index
    %4 = vector.load %arg2[%c0_3, %c0_4, %c0_5] : memref<2x32x4096xf32, #tpu.memory_space<vmem>>, vector<2x32x4096xf32>
    %cst = arith.constant dense<0.000000e+00> : vector<2x32xf32>
    %5 = vector.multi_reduction <add>, %4, %cst [2] : vector<2x32x4096xf32> to vector<2x32xf32>
    %6 = vector.shape_cast %5 : vector<2x32xf32> to vector<2x32x1xf32>
    %7 = arith.addf %3, %6 : vector<2x32x1xf32>
    %c0_6 = arith.constant 0 : index
    %c0_7 = arith.constant 0 : index
    %c0_8 = arith.constant 0 : index
    %8 = vector.load %arg6[%c0_6, %c0_7, %c0_8] : memref<2x32x1xf32, #tpu.memory_space<vmem>>, vector<2x32x1xf32>
    tpu.vector_store %arg6[%c0_6, %c0_7, %c0_8], %7 {strides = array<i32>} : memref<2x32x1xf32, #tpu.memory_space<vmem>>, vector<2x32x1xf32>,
    %c0_i32_9 = arith.constant 0 : i32
    %9 = arith.cmpi eq, %arg1, %c0_i32_9 : i32
    %10 = arith.extui %9 : i1 to i32
    %c0_i32_10 = arith.constant 0 : i32
    %11 = arith.cmpi ne, %10, %c0_i32_10 : i32
    scf.if %11 {
      %c0_11 = arith.constant 0 : index
      %c0_12 = arith.constant 0 : index
      %c0_13 = arith.constant 0 : index
      %12 = vector.load %arg6[%c0_11, %c0_12, %c0_13] : memref<2x32x1xf32, #tpu.memory_space<vmem>>, vector<2x32x1xf32>
      %cst_14 = arith.constant dense<0.000000e+00> : vector<2x32xf32>
      %13 = vector.multi_reduction <add>, %12, %cst_14 [2] : vector<2x32x1xf32> to vector<2x32xf32>
      %cst_15 = arith.constant 2.44140625E-4 : f32
      %14 = vector.broadcast %cst_15 : f32 to vector<2x32xf32>
      %15 = arith.mulf %13, %14 : vector<2x32xf32>
      %c0_16 = arith.constant 0 : index
      %c0_17 = arith.constant 0 : index
      %16 = vector.load %arg3[%c0_16, %c0_17] : memref<2x32xf32, #tpu.memory_space<vmem>>, vector<2x32xf32>
      %c0_18 = arith.constant 0 : index
      %c0_19 = arith.constant 0 : index
      %17 = vector.load %arg4[%c0_18, %c0_19] : memref<2x32xf32, #tpu.memory_space<vmem>>, vector<2x32xf32>
      %cst_20 = arith.constant 0.000000e+00 : f32
      %18 = vector.broadcast %cst_20 : f32 to vector<2x32xf32>
      %19 = vector.extract_strided_slice %16 {offsets = [0, 0], sizes = [1, 32], strides = [1, 1]} : vector<2x32xf32> to vector<1x32xf32>
      %20 = vector.broadcast %19 : vector<1x32xf32> to vector<2x32xf32>
      %21 = arith.mulf %15, %20 : vector<2x32xf32>
      %cst_21 = arith.constant dense<0.000000e+00> : vector<2xf32>
      %22 = vector.multi_reduction <add>, %21, %cst_21 [1] : vector<2x32xf32> to vector<2xf32>
      %23 = vector.shape_cast %22 : vector<2xf32> to vector<2x1xf32>
      %cst_22 = arith.constant 0.000000e+00 : f32
      %24 = vector.broadcast %cst_22 : f32 to vector<2x1xf32>
      %25 = arith.maximumf %23, %24 : vector<2x1xf32>
      %26 = vector.extract_strided_slice %17 {offsets = [0, 0], sizes = [1, 32], strides = [1, 1]} : vector<2x32xf32> to vector<1x32xf32>
      %27 = vector.broadcast %25 : vector<2x1xf32> to vector<2x32xf32>
      %28 = vector.broadcast %26 : vector<1x32xf32> to vector<2x32xf32>
      %29 = arith.mulf %27, %28 : vector<2x32xf32>
      %30 = arith.addf %18, %29 : vector<2x32xf32>
      %31 = vector.extract_strided_slice %16 {offsets = [1, 0], sizes = [1, 32], strides = [1, 1]} : vector<2x32xf32> to vector<1x32xf32>
      %32 = vector.broadcast %31 : vector<1x32xf32> to vector<2x32xf32>
      %33 = arith.mulf %15, %32 : vector<2x32xf32>
      %cst_23 = arith.constant dense<0.000000e+00> : vector<2xf32>
      %34 = vector.multi_reduction <add>, %33, %cst_23 [1] : vector<2x32xf32> to vector<2xf32>
      %35 = vector.shape_cast %34 : vector<2xf32> to vector<2x1xf32>
      %cst_24 = arith.constant 0.000000e+00 : f32
      %36 = vector.broadcast %cst_24 : f32 to vector<2x1xf32>
      %37 = arith.maximumf %35, %36 : vector<2x1xf32>
      %38 = vector.extract_strided_slice %17 {offsets = [1, 0], sizes = [1, 32], strides = [1, 1]} : vector<2x32xf32> to vector<1x32xf32>
      %39 = vector.broadcast %37 : vector<2x1xf32> to vector<2x32xf32>
      %40 = vector.broadcast %38 : vector<1x32xf32> to vector<2x32xf32>
      %41 = arith.mulf %39, %40 : vector<2x32xf32>
      %42 = arith.addf %30, %41 : vector<2x32xf32>
      %43 = arith.addf %42, %42 : vector<2x32xf32>
      %44 = arith.negf %43 : vector<2x32xf32>
      %45 = math.exp %44 : vector<2x32xf32>
      %cst_25 = arith.constant 1.000000e+00 : f32
      %46 = vector.broadcast %cst_25 : f32 to vector<2x32xf32>
      %47 = arith.addf %46, %45 : vector<2x32xf32>
      %48 = arith.divf %46, %47 : vector<2x32xf32>
      %c0_26 = arith.constant 0 : index
      %c0_27 = arith.constant 0 : index
      %c0_28 = arith.constant 0 : index
      %49 = vector.load %arg5[%c0_26, %c0_27, %c0_28] : memref<1x2x32xf32, #tpu.memory_space<vmem>>, vector<1x2x32xf32>
      %50 = vector.shape_cast %49 : vector<1x2x32xf32> to vector<2x32xf32>
      %51 = vector.shape_cast %48 : vector<2x32xf32> to vector<1x2x32xf32>
      tpu.vector_store %arg5[%c0_26, %c0_27, %c0_28], %51 {strides = array<i32>} : memref<1x2x32xf32, #tpu.memory_space<vmem>>, vector<1x2x32xf32>,
    } else {
    }
    return
  }
  func.func @transform_0(%arg0: i32, %arg1: i32) -> (i32, i32, i32) {
    %c0_i32 = arith.constant 0 : i32
    %c0_i32_0 = arith.constant 0 : i32
    return %arg0, %c0_i32, %arg1 : i32, i32, i32
  }
  func.func @transform_1(%arg0: i32, %arg1: i32) -> (i32, i32) {
    %c0_i32 = arith.constant 0 : i32
    %c0_i32_0 = arith.constant 0 : i32
    %c0_i32_1 = arith.constant 0 : i32
    return %c0_i32, %c0_i32_0 : i32, i32
  }
  func.func @transform_2(%arg0: i32, %arg1: i32) -> (i32, i32) {
    %c0_i32 = arith.constant 0 : i32
    %c0_i32_0 = arith.constant 0 : i32
    %c0_i32_1 = arith.constant 0 : i32
    return %c0_i32, %c0_i32_0 : i32, i32
  }
  func.func @transform_3(%arg0: i32, %arg1: i32) -> (i32, i32, i32) {
    %c0_i32 = arith.constant 0 : i32
    %c0_i32_0 = arith.constant 0 : i32
    %c0_i32_1 = arith.constant 0 : i32
    return %arg0, %c0_i32, %c0_i32_0 : i32, i32, i32
  }
}

</mosaic_0001>

<llo_original>
// kernel: tpu_custom_call.1
$region0: #{tpu_custom_call.1}
  #allocation0 [shape = 'u32[]', space=smem, size = 0x4, offset = 0x4, fixed_abs, tag = 'smem constant byte address 0x4 - core index']
  #allocation1 [shape = 'u32[144,128]{1,0:T(1,128)}', space=vmem, size = 0x12000, scoped, tag = 'internal scratch']
  #allocation2 [shape = 'f32[2,32,1]{2,1,0:T(8,128)}', space=vmem, size = 0x8000, scoped, tag = 'scratch operand']
  %s0 = inlined_call_operand.hbm [shape: f32[2,32,4096], index: 0, kind: input, shape index: {}]
  %s1 = inlined_call_operand.vmem [shape: f32[2,32], index: 1, kind: input, shape index: {}]
  %s2 = inlined_call_operand.vmem [shape: f32[2,32], index: 2, kind: input, shape index: {}]
  %s3 = inlined_call_operand.hbm [shape: f32[1,2,32], index: 3, kind: output, shape index: {}]
  %s4 = sld [smem:[#allocation0]]
  $region34: #{tpu_custom_call.1} parent=0
    _
  %s6 = ssub.s32 1, %s4
  %s7 = scalar_select 0, %s6, %s4
  $region1: #{tpu_custom_call.1} parent=0
    #allocation3 [shape = 'u8[1048576]{0}', space=vmem, size = 0x100000, scoped, tag = 'input window, operand 0, single buffered']
    #allocation4 [shape = 's32[1]{0}', space=sflag, size = 0x4, scoped, tag = 'scoped memory for tpu_custom_call.1']
    #allocation5 [shape = 's32[1]{0}', space=sflag, size = 0x4, scoped, tag = 'scoped memory for tpu_custom_call.1']
    #allocation6 [shape = 'u8[1024]{0}', space=vmem, size = 0x400, scoped, tag = 'output window, operand 0, single buffered']
    %8 = vsyncpa [#allocation4], 0
    %9 = vsyncpa [#allocation5], 0
    // Predicated region
    $region2: #{tpu_custom_call.1} parent=1 // pred_check
      _
    $region3: #{tpu_custom_call.1} parent=1 // pred_check_branch
      %11 = sbr.rel (0) target = $region5
    $region4: #{tpu_custom_call.1} parent=1 // pred_region
      %s13 = ssub.s32 32768, 32768
      %14 = vsyncadd [#allocation4], %s13
      %s15 = sshll.u32 [#allocation3], 4
      %s16 = int_to_ptr.vmem [resolvable:$true] %s15
      %21 = dma.hbm_to_vmem [thread:$0]  %s0, 32768, %s16, [#allocation4], 4096, 4096, 256
    $region5: #{tpu_custom_call.1} parent=1 // pred_fallthru
      _
    // Predicated region
    $region6: #{tpu_custom_call.1} parent=1 // pred_check
      _
    $region7: #{tpu_custom_call.1} parent=1 // pred_check_branch
      %23 = sbr.rel (0) target = $region9
    $region8: #{tpu_custom_call.1} parent=1 // pred_region
      _
    $region9: #{tpu_custom_call.1} parent=1 // pred_fallthru
      _
    // Predicated region
    $region10: #{tpu_custom_call.1} parent=1 // pred_check
      _
    $region11: #{tpu_custom_call.1} parent=1 // pred_check_branch
      %25 = sbr.rel (0) target = $region13
    $region12: #{tpu_custom_call.1} parent=1 // pred_region
      _
    $region13: #{tpu_custom_call.1} parent=1 // pred_fallthru
      _
    // Predicated region
    $region14: #{tpu_custom_call.1} parent=1 // pred_check
      _
    $region15: #{tpu_custom_call.1} parent=1 // pred_check_branch
      %27 = sbr.rel (0) target = $region17
    $region16: #{tpu_custom_call.1} parent=1 // pred_region
      %28 = dma.done [#allocation4], 32768
    $region17: #{tpu_custom_call.1} parent=1 // pred_fallthru
      _
    %p29 = scmp.eq.s32.totalorder 0, 0
    // Predicated region
    $region18: #{tpu_custom_call.1} parent=1 // pred_check
      %p30 = pneg %p29
    $region19: #{tpu_custom_call.1} parent=1 // pred_check_branch
      %32 = sbr.rel (%p30) target = $region21
    $region20: #{tpu_custom_call.1} parent=1 // pred_region
      %vm33 = vcmask 7168
      %34 = vst.msk [vmem:[#allocation2] sm:$0xff] %vm33, 0.0
      %35 = vst.msk [vmem:[#allocation2 + $0x8] sm:$0xff] %vm33, 0.0
      %36 = vst.msk [vmem:[#allocation2 + $0x10] sm:$0xff] %vm33, 0.0
      %37 = vst.msk [vmem:[#allocation2 + $0x18] sm:$0xff] %vm33, 0.0
      %38 = vst.msk [vmem:[#allocation2 + $0x20] sm:$0xff] %vm33, 0.0
      %39 = vst.msk [vmem:[#allocation2 + $0x28] sm:$0xff] %vm33, 0.0
      %40 = vst.msk [vmem:[#allocation2 + $0x30] sm:$0xff] %vm33, 0.0
      %41 = vst.msk [vmem:[#allocation2 + $0x38] sm:$0xff] %vm33, 0.0
    $region21: #{tpu_custom_call.1} parent=1 // pred_fallthru
      _
    %v42 = vld [vmem:[#allocation2] sm:$0xff]
    %v43 = vld [vmem:[#allocation2 + $0x8] sm:$0xff]
    %v44 = vld [vmem:[#allocation2 + $0x10] sm:$0xff]
    %v45 = vld [vmem:[#allocation2 + $0x18] sm:$0xff]
    %v46 = vld [vmem:[#allocation2 + $0x20] sm:$0xff]
    %v47 = vld [vmem:[#allocation2 + $0x28] sm:$0xff]
    %v48 = vld [vmem:[#allocation2 + $0x30] sm:$0xff]
    %v49 = vld [vmem:[#allocation2 + $0x38] sm:$0xff]
    %v50 = vld [vmem:[#allocation3] sm:$0xff]
    %v51 = vld [vmem:[#allocation3 + $0x8] sm:$0xff]
    %v52 = vld [vmem:[#allocation3 + $0x10] sm:$0xff]
    %v53 = vld [vmem:[#allocation3 + $0x18] sm:$0xff]
    %v54 = vld [vmem:[#allocation3 + $0x20] sm:$0xff]
    %v55 = vld [vmem:[#allocation3 + $0x28] sm:$0xff]
    %v56 = vld [vmem:[#allocation3 + $0x30] sm:$0xff]
    %v57 = vld [vmem:[#allocation3 + $0x38] sm:$0xff]
    %v58 = vld [vmem:[#allocation3 + $0x40] sm:$0xff]
    %v59 = vld [vmem:[#allocation3 + $0x48] sm:$0xff]
    %v60 = vld [vmem:[#allocation3 + $0x50] sm:$0xff]
    %v61 = vld [vmem:[#allocation3 + $0x58] sm:$0xff]
    %v62 = vld [vmem:[#allocation3 + $0x60] sm:$0xff]
    %v63 = vld [vmem:[#allocation3 + $0x68] sm:$0xff]
    %v64 = vld [vmem:[#allocation3 + $0x70] sm:$0xff]
    %v65 = vld [vmem:[#allocation3 + $0x78] sm:$0xff]
    %v66 = vld [vmem:[#allocation3 + $0x80] sm:$0xff]
    %v67 = vld [vmem:[#allocation3 + $0x88] sm:$0xff]
    %v68 = vld [vmem:[#allocation3 + $0x90] sm:$0xff]
    %v69 = vld [vmem:[#allocation3 + $0x98] sm:$0xff]
    %v70 = vld [vmem:[#allocation3 + $0xa0] sm:$0xff]
    %v71 = vld [vmem:[#allocation3 + $0xa8] sm:$0xff]
    %v72 = vld [vmem:[#allocation3 + $0xb0] sm:$0xff]
    %v73 = vld [vmem:[#allocation3 + $0xb8] sm:$0xff]
    %v74 = vld [vmem:[#allocation3 + $0xc0] sm:$0xff]
    %v75 = vld [vmem:[#allocation3 + $0xc8] sm:$0xff]
    %v76 = vld [vmem:[#allocation3 + $0xd0] sm:$0xff]
    %v77 = vld [vmem:[#allocation3 + $0xd8] sm:$0xff]
    %v78 = vld [vmem:[#allocation3 + $0xe0] sm:$0xff]
    %v79 = vld [vmem:[#allocation3 + $0xe8] sm:$0xff]
    %v80 = vld [vmem:[#allocation3 + $0xf0] sm:$0xff]
    %v81 = vld [vmem:[#allocation3 + $0xf8] sm:$0xff]
    %v82 = vld [vmem:[#allocation3 + $0x100] sm:$0xff]
    %v83 = vld [vmem:[#allocation3 + $0x108] sm:$0xff]
    %v84 = vld [vmem:[#allocation3 + $0x110] sm:$0xff]
    %v85 = vld [vmem:[#allocation3 + $0x118] sm:$0xff]
    %v86 = vld [vmem:[#allocation3 + $0x120] sm:$0xff]
    %v87 = vld [vmem:[#allocation3 + $0x128] sm:$0xff]
    %v88 = vld [vmem:[#allocation3 + $0x130] sm:$0xff]
    %v89 = vld [vmem:[#allocation3 + $0x138] sm:$0xff]
    %v90 = vld [vmem:[#allocation3 + $0x140] sm:$0xff]
    %v91 = vld [vmem:[#allocation3 + $0x148] sm:$0xff]
    %v92 = vld [vmem:[#allocation3 + $0x150] sm:$0xff]
    %v93 = vld [vmem:[#allocation3 + $0x158] sm:$0xff]
    %v94 = vld [vmem:[#allocation3 + $0x160] sm:$0xff]
    %v95 = vld [vmem:[#allocation3 + $0x168] sm:$0xff]
    %v96 = vld [vmem:[#allocation3 + $0x170] sm:$0xff]
    %v97 = vld [vmem:[#allocation3 + $0x178] sm:$0xff]
    %v98 = vld [vmem:[#allocation3 + $0x180] sm:$0xff]
    %v99 = vld [vmem:[#allocation3 + $0x188] sm:$0xff]
    %v100 = vld [vmem:[#allocation3 + $0x190] sm:$0xff]
    %v101 = vld [vmem:[#allocation3 + $0x198] sm:$0xff]
    %v102 = vld [vmem:[#allocation3 + $0x1a0] sm:$0xff]
    %v103 = vld [vmem:[#allocation3 + $0x1a8] sm:$0xff]
    %v104 = vld [vmem:[#allocation3 + $0x1b0] sm:$0xff]
    %v105 = vld [vmem:[#allocation3 + $0x1b8] sm:$0xff]
    %v106 = vld [vmem:[#allocation3 + $0x1c0] sm:$0xff]
    %v107 = vld [vmem:[#allocation3 + $0x1c8] sm:$0xff]
    %v108 = vld [vmem:[#allocation3 + $0x1d0] sm:$0xff]
    %v109 = vld [vmem:[#allocation3 + $0x1d8] sm:$0xff]
    %v110 = vld [vmem:[#allocation3 + $0x1e0] sm:$0xff]
    %v111 = vld [vmem:[#allocation3 + $0x1e8] sm:$0xff]
    %v112 = vld [vmem:[#allocation3 + $0x1f0] sm:$0xff]
    %v113 = vld [vmem:[#allocation3 + $0x1f8] sm:$0xff]
    %v114 = vld [vmem:[#allocation3 + $0x200] sm:$0xff]
    %v115 = vld [vmem:[#allocation3 + $0x208] sm:$0xff]
    %v116 = vld [vmem:[#allocation3 + $0x210] sm:$0xff]
    %v117 = vld [vmem:[#allocation3 + $0x218] sm:$0xff]
    %v118 = vld [vmem:[#allocation3 + $0x220] sm:$0xff]
    %v119 = vld [vmem:[#allocation3 + $0x228] sm:$0xff]
    %v120 = vld [vmem:[#allocation3 + $0x230] sm:$0xff]
    %v121 = vld [vmem:[#allocation3 + $0x238] sm:$0xff]
    %v122 = vld [vmem:[#allocation3 + $0x240] sm:$0xff]
    %v123 = vld [vmem:[#allocation3 + $0x248] sm:$0xff]
    %v124 = vld [vmem:[#allocation3 + $0x250] sm:$0xff]
    %v125 = vld [vmem:[#allocation3 + $0x258] sm:$0xff]
    %v126 = vld [vmem:[#allocation3 + $0x260] sm:$0xff]
    %v127 = vld [vmem:[#allocation3 + $0x268] sm:$0xff]
    %v128 = vld [vmem:[#allocation3 + $0x270] sm:$0xff]
    %v129 = vld [vmem:[#allocation3 + $0x278] sm:$0xff]
    %v130 = vld [vmem:[#allocation3 + $0x280] sm:$0xff]
    %v131 = vld [vmem:[#allocation3 + $0x288] sm:$0xff]
    %v132 = vld [vmem:[#allocation3 + $0x290] sm:$0xff]
    %v133 = vld [vmem:[#allocation3 + $0x298] sm:$0xff]
    %v134 = vld [vmem:[#allocation3 + $0x2a0] sm:$0xff]
    %v135 = vld [vmem:[#allocation3 + $0x2a8] sm:$0xff]
    %v136 = vld [vmem:[#allocation3 + $0x2b0] sm:$0xff]
    %v137 = vld [vmem:[#allocation3 + $0x2b8] sm:$0xff]
    %v138 = vld [vmem:[#allocation3 + $0x2c0] sm:$0xff]
    %v139 = vld [vmem:[#allocation3 + $0x2c8] sm:$0xff]
    %v140 = vld [vmem:[#allocation3 + $0x2d0] sm:$0xff]
    %v141 = vld [vmem:[#allocation3 + $0x2d8] sm:$0xff]
    %v142 = vld [vmem:[#allocation3 + $0x2e0] sm:$0xff]
    %v143 = vld [vmem:[#allocation3 + $0x2e8] sm:$0xff]
    %v144 = vld [vmem:[#allocation3 + $0x2f0] sm:$0xff]
    %v145 = vld [vmem:[#allocation3 + $0x2f8] sm:$0xff]
    %v146 = vld [vmem:[#allocation3 + $0x300] sm:$0xff]
    %v147 = vld [vmem:[#allocation3 + $0x308] sm:$0xff]
    %v148 = vld [vmem:[#allocation3 + $0x310] sm:$0xff]
    %v149 = vld [vmem:[#allocation3 + $0x318] sm:$0xff]
    %v150 = vld [vmem:[#allocation3 + $0x320] sm:$0xff]
    %v151 = vld [vmem:[#allocation3 + $0x328] sm:$0xff]
    %v152 = vld [vmem:[#allocation3 + $0x330] sm:$0xff]
    %v153 = vld [vmem:[#allocation3 + $0x338] sm:$0xff]
    %v154 = vld [vmem:[#allocation3 + $0x340] sm:$0xff]
    %v155 = vld [vmem:[#allocation3 + $0x348] sm:$0xff]
    %v156 = vld [vmem:[#allocation3 + $0x350] sm:$0xff]
    %v157 = vld [vmem:[#allocation3 + $0x358] sm:$0xff]
    %v158 = vld [vmem:[#allocation3 + $0x360] sm:$0xff]
    %v159 = vld [vmem:[#allocation3 + $0x368] sm:$0xff]
    %v160 = vld [vmem:[#allocation3 + $0x370] sm:$0xff]
    %v161 = vld [vmem:[#allocation3 + $0x378] sm:$0xff]
    %v162 = vld [vmem:[#allocation3 + $0x380] sm:$0xff]
    %v163 = vld [vmem:[#allocation3 + $0x388] sm:$0xff]
    %v164 = vld [vmem:[#allocation3 + $0x390] sm:$0xff]
    %v165 = vld [vmem:[#allocation3 + $0x398] sm:$0xff]
    %v166 = vld [vmem:[#allocation3 + $0x3a0] sm:$0xff]
    %v167 = vld [vmem:[#allocation3 + $0x3a8] sm:$0xff]
    %v168 = vld [vmem:[#allocation3 + $0x3b0] sm:$0xff]
    %v169 = vld [vmem:[#allocation3 + $0x3b8] sm:$0xff]
    %v170 = vld [vmem:[#allocation3 + $0x3c0] sm:$0xff]
    %v171 = vld [vmem:[#allocation3 + $0x3c8] sm:$0xff]
    %v172 = vld [vmem:[#allocation3 + $0x3d0] sm:$0xff]
    %v173 = vld [vmem:[#allocation3 + $0x3d8] sm:$0xff]
    %v174 = vld [vmem:[#allocation3 + $0x3e0] sm:$0xff]
    %v175 = vld [vmem:[#allocation3 + $0x3e8] sm:$0xff]
    %v176 = vld [vmem:[#allocation3 + $0x3f0] sm:$0xff]
    %v177 = vld [vmem:[#allocation3 + $0x3f8] sm:$0xff]
    %v178 = vld [vmem:[#allocation3 + $0x400] sm:$0xff]
    %v179 = vld [vmem:[#allocation3 + $0x408] sm:$0xff]
    %v180 = vld [vmem:[#allocation3 + $0x410] sm:$0xff]
    %v181 = vld [vmem:[#allocation3 + $0x418] sm:$0xff]
    %v182 = vld [vmem:[#allocation3 + $0x420] sm:$0xff]
    %v183 = vld [vmem:[#allocation3 + $0x428] sm:$0xff]
    %v184 = vld [vmem:[#allocation3 + $0x430] sm:$0xff]
    %v185 = vld [vmem:[#allocation3 + $0x438] sm:$0xff]
    %v186 = vld [vmem:[#allocation3 + $0x440] sm:$0xff]
    %v187 = vld [vmem:[#allocation3 + $0x448] sm:$0xff]
    %v188 = vld [vmem:[#allocation3 + $0x450] sm:$0xff]
    %v189 = vld [vmem:[#allocation3 + $0x458] sm:$0xff]
    %v190 = vld [vmem:[#allocation3 + $0x460] sm:$0xff]
    %v191 = vld [vmem:[#allocation3 + $0x468] sm:$0xff]
    %v192 = vld [vmem:[#allocation3 + $0x470] sm:$0xff]
    %v193 = vld [vmem:[#allocation3 + $0x478] sm:$0xff]
    %v194 = vld [vmem:[#allocation3 + $0x480] sm:$0xff]
    %v195 = vld [vmem:[#allocation3 + $0x488] sm:$0xff]
    %v196 = vld [vmem:[#allocation3 + $0x490] sm:$0xff]
    %v197 = vld [vmem:[#allocation3 + $0x498] sm:$0xff]
    %v198 = vld [vmem:[#allocation3 + $0x4a0] sm:$0xff]
    %v199 = vld [vmem:[#allocation3 + $0x4a8] sm:$0xff]
    %v200 = vld [vmem:[#allocation3 + $0x4b0] sm:$0xff]
    %v201 = vld [vmem:[#allocation3 + $0x4b8] sm:$0xff]
    %v202 = vld [vmem:[#allocation3 + $0x4c0] sm:$0xff]
    %v203 = vld [vmem:[#allocation3 + $0x4c8] sm:$0xff]
    %v204 = vld [vmem:[#allocation3 + $0x4d0] sm:$0xff]
    %v205 = vld [vmem:[#allocation3 + $0x4d8] sm:$0xff]
    %v206 = vld [vmem:[#allocation3 + $0x4e0] sm:$0xff]
    %v207 = vld [vmem:[#allocation3 + $0x4e8] sm:$0xff]
    %v208 = vld [vmem:[#allocation3 + $0x4f0] sm:$0xff]
    %v209 = vld [vmem:[#allocation3 + $0x4f8] sm:$0xff]
    %v210 = vld [vmem:[#allocation3 + $0x500] sm:$0xff]
    %v211 = vld [vmem:[#allocation3 + $0x508] sm:$0xff]
    %v212 = vld [vmem:[#allocation3 + $0x510] sm:$0xff]
    %v213 = vld [vmem:[#allocation3 + $0x518] sm:$0xff]
    %v214 = vld [vmem:[#allocation3 + $0x520] sm:$0xff]
    %v215 = vld [vmem:[#allocation3 + $0x528] sm:$0xff]
    %v216 = vld [vmem:[#allocation3 + $0x530] sm:$0xff]
    %v217 = vld [vmem:[#allocation3 + $0x538] sm:$0xff]
    %v218 = vld [vmem:[#allocation3 + $0x540] sm:$0xff]
    %v219 = vld [vmem:[#allocation3 + $0x548] sm:$0xff]
    %v220 = vld [vmem:[#allocation3 + $0x550] sm:$0xff]
    %v221 = vld [vmem:[#allocation3 + $0x558] sm:$0xff]
    %v222 = vld [vmem:[#allocation3 + $0x560] sm:$0xff]
    %v223 = vld [vmem:[#allocation3 + $0x568] sm:$0xff]
    %v224 = vld [vmem:[#allocation3 + $0x570] sm:$0xff]
    %v225 = vld [vmem:[#allocation3 + $0x578] sm:$0xff]
    %v226 = vld [vmem:[#allocation3 + $0x580] sm:$0xff]
    %v227 = vld [vmem:[#allocation3 + $0x588] sm:$0xff]
    %v228 = vld [vmem:[#allocation3 + $0x590] sm:$0xff]
    %v229 = vld [vmem:[#allocation3 + $0x598] sm:$0xff]
    %v230 = vld [vmem:[#allocation3 + $0x5a0] sm:$0xff]
    %v231 = vld [vmem:[#allocation3 + $0x5a8] sm:$0xff]
    %v232 = vld [vmem:[#allocation3 + $0x5b0] sm:$0xff]
    %v233 = vld [vmem:[#allocation3 + $0x5b8] sm:$0xff]
    %v234 = vld [vmem:[#allocation3 + $0x5c0] sm:$0xff]
    %v235 = vld [vmem:[#allocation3 + $0x5c8] sm:$0xff]
    %v236 = vld [vmem:[#allocation3 + $0x5d0] sm:$0xff]
    %v237 = vld [vmem:[#allocation3 + $0x5d8] sm:$0xff]
    %v238 = vld [vmem:[#allocation3 + $0x5e0] sm:$0xff]
    %v239 = vld [vmem:[#allocation3 + $0x5e8] sm:$0xff]
    %v240 = vld [vmem:[#allocation3 + $0x5f0] sm:$0xff]
    %v241 = vld [vmem:[#allocation3 + $0x5f8] sm:$0xff]
    %v242 = vld [vmem:[#allocation3 + $0x600] sm:$0xff]
    %v243 = vld [vmem:[#allocation3 + $0x608] sm:$0xff]
    %v244 = vld [vmem:[#allocation3 + $0x610] sm:$0xff]
    %v245 = vld [vmem:[#allocation3 + $0x618] sm:$0xff]
    %v246 = vld [vmem:[#allocation3 + $0x620] sm:$0xff]
    %v247 = vld [vmem:[#allocation3 + $0x628] sm:$0xff]
    %v248 = vld [vmem:[#allocation3 + $0x630] sm:$0xff]
    %v249 = vld [vmem:[#allocation3 + $0x638] sm:$0xff]
    %v250 = vld [vmem:[#allocation3 + $0x640] sm:$0xff]
    %v251 = vld [vmem:[#allocation3 + $0x648] sm:$0xff]
    %v252 = vld [vmem:[#allocation3 + $0x650] sm:$0xff]
    %v253 = vld [vmem:[#allocation3 + $0x658] sm:$0xff]
    %v254 = vld [vmem:[#allocation3 + $0x660] sm:$0xff]
    %v255 = vld [vmem:[#allocation3 + $0x668] sm:$0xff]
    %v256 = vld [vmem:[#allocation3 + $0x670] sm:$0xff]
    %v257 = vld [vmem:[#allocation3 + $0x678] sm:$0xff]
    %v258 = vld [vmem:[#allocation3 + $0x680] sm:$0xff]
    %v259 = vld [vmem:[#allocation3 + $0x688] sm:$0xff]
    %v260 = vld [vmem:[#allocation3 + $0x690] sm:$0xff]
    %v261 = vld [vmem:[#allocation3 + $0x698] sm:$0xff]
    %v262 = vld [vmem:[#allocation3 + $0x6a0] sm:$0xff]
    %v263 = vld [vmem:[#allocation3 + $0x6a8] sm:$0xff]
    %v264 = vld [vmem:[#allocation3 + $0x6b0] sm:$0xff]
    %v265 = vld [vmem:[#allocation3 + $0x6b8] sm:$0xff]
    %v266 = vld [vmem:[#allocation3 + $0x6c0] sm:$0xff]
    %v267 = vld [vmem:[#allocation3 + $0x6c8] sm:$0xff]
    %v268 = vld [vmem:[#allocation3 + $0x6d0] sm:$0xff]
    %v269 = vld [vmem:[#allocation3 + $0x6d8] sm:$0xff]
    %v270 = vld [vmem:[#allocation3 + $0x6e0] sm:$0xff]
    %v271 = vld [vmem:[#allocation3 + $0x6e8] sm:$0xff]
    %v272 = vld [vmem:[#allocation3 + $0x6f0] sm:$0xff]
    %v273 = vld [vmem:[#allocation3 + $0x6f8] sm:$0xff]
    %v274 = vld [vmem:[#allocation3 + $0x700] sm:$0xff]
    %v275 = vld [vmem:[#allocation3 + $0x708] sm:$0xff]
    %v276 = vld [vmem:[#allocation3 + $0x710] sm:$0xff]
    %v277 = vld [vmem:[#allocation3 + $0x718] sm:$0xff]
    %v278 = vld [vmem:[#allocation3 + $0x720] sm:$0xff]
    %v279 = vld [vmem:[#allocation3 + $0x728] sm:$0xff]
    %v280 = vld [vmem:[#allocation3 + $0x730] sm:$0xff]
    %v281 = vld [vmem:[#allocation3 + $0x738] sm:$0xff]
    %v282 = vld [vmem:[#allocation3 + $0x740] sm:$0xff]
    %v283 = vld [vmem:[#allocation3 + $0x748] sm:$0xff]
    %v284 = vld [vmem:[#allocation3 + $0x750] sm:$0xff]
    %v285 = vld [vmem:[#allocation3 + $0x758] sm:$0xff]
    %v286 = vld [vmem:[#allocation3 + $0x760] sm:$0xff]
    %v287 = vld [vmem:[#allocation3 + $0x768] sm:$0xff]
    %v288 = vld [vmem:[#allocation3 + $0x770] sm:$0xff]
    %v289 = vld [vmem:[#allocation3 + $0x778] sm:$0xff]
    %v290 = vld [vmem:[#allocation3 + $0x780] sm:$0xff]
    %v291 = vld [vmem:[#allocation3 + $0x788] sm:$0xff]
    %v292 = vld [vmem:[#allocation3 + $0x790] sm:$0xff]
    %v293 = vld [vmem:[#allocation3 + $0x798] sm:$0xff]
    %v294 = vld [vmem:[#allocation3 + $0x7a0] sm:$0xff]
    %v295 = vld [vmem:[#allocation3 + $0x7a8] sm:$0xff]
    %v296 = vld [vmem:[#allocation3 + $0x7b0] sm:$0xff]
    %v297 = vld [vmem:[#allocation3 + $0x7b8] sm:$0xff]
    %v298 = vld [vmem:[#allocation3 + $0x7c0] sm:$0xff]
    %v299 = vld [vmem:[#allocation3 + $0x7c8] sm:$0xff]
    %v300 = vld [vmem:[#allocation3 + $0x7d0] sm:$0xff]
    %v301 = vld [vmem:[#allocation3 + $0x7d8] sm:$0xff]
    %v302 = vld [vmem:[#allocation3 + $0x7e0] sm:$0xff]
    %v303 = vld [vmem:[#allocation3 + $0x7e8] sm:$0xff]
    %v304 = vld [vmem:[#allocation3 + $0x7f0] sm:$0xff]
    %v305 = vld [vmem:[#allocation3 + $0x7f8] sm:$0xff]
    %v306 = vadd.f32 %v50, %v51
    %v307 = vadd.f32 %v306, %v52
    %v308 = vadd.f32 %v307, %v53
    %v309 = vadd.f32 %v308, %v54
    %v310 = vadd.f32 %v309, %v55
    %v311 = vadd.f32 %v310, %v56
    %v312 = vadd.f32 %v311, %v57
    %v313 = vadd.f32 %v312, %v58
    %v314 = vadd.f32 %v313, %v59
    %v315 = vadd.f32 %v314, %v60
    %v316 = vadd.f32 %v315, %v61
    %v317 = vadd.f32 %v316, %v62
    %v318 = vadd.f32 %v317, %v63
    %v319 = vadd.f32 %v318, %v64
    %v320 = vadd.f32 %v319, %v65
    %v321 = vadd.f32 %v320, %v66
    %v322 = vadd.f32 %v321, %v67
    %v323 = vadd.f32 %v322, %v68
    %v324 = vadd.f32 %v323, %v69
    %v325 = vadd.f32 %v324, %v70
    %v326 = vadd.f32 %v325, %v71
    %v327 = vadd.f32 %v326, %v72
    %v328 = vadd.f32 %v327, %v73
    %v329 = vadd.f32 %v328, %v74
    %v330 = vadd.f32 %v329, %v75
    %v331 = vadd.f32 %v330, %v76
    %v332 = vadd.f32 %v331, %v77
    %v333 = vadd.f32 %v332, %v78
    %v334 = vadd.f32 %v333, %v79
    %v335 = vadd.f32 %v334, %v80
    %v336 = vadd.f32 %v335, %v81
    %337 = vadd.xlane.f32.xlu0 %v336
    %v338 = vpop.xlane.xlu0 %337
    %v339 = vadd.f32 %v82, %v83
    %v340 = vadd.f32 %v339, %v84
    %v341 = vadd.f32 %v340, %v85
    %v342 = vadd.f32 %v341, %v86
    %v343 = vadd.f32 %v342, %v87
    %v344 = vadd.f32 %v343, %v88
    %v345 = vadd.f32 %v344, %v89
    %v346 = vadd.f32 %v345, %v90
    %v347 = vadd.f32 %v346, %v91
    %v348 = vadd.f32 %v347, %v92
    %v349 = vadd.f32 %v348, %v93
    %v350 = vadd.f32 %v349, %v94
    %v351 = vadd.f32 %v350, %v95
    %v352 = vadd.f32 %v351, %v96
    %v353 = vadd.f32 %v352, %v97
    %v354 = vadd.f32 %v353, %v98
    %v355 = vadd.f32 %v354, %v99
    %v356 = vadd.f32 %v355, %v100
    %v357 = vadd.f32 %v356, %v101
    %v358 = vadd.f32 %v357, %v102
    %v359 = vadd.f32 %v358, %v103
    %v360 = vadd.f32 %v359, %v104
    %v361 = vadd.f32 %v360, %v105
    %v362 = vadd.f32 %v361, %v106
    %v363 = vadd.f32 %v362, %v107
    %v364 = vadd.f32 %v363, %v108
    %v365 = vadd.f32 %v364, %v109
    %v366 = vadd.f32 %v365, %v110
    %v367 = vadd.f32 %v366, %v111
    %v368 = vadd.f32 %v367, %v112
    %v369 = vadd.f32 %v368, %v113
    %370 = vadd.xlane.f32.xlu0 %v369
    %v371 = vpop.xlane.xlu0 %370
    %v372 = vadd.f32 %v114, %v115
    %v373 = vadd.f32 %v372, %v116
    %v374 = vadd.f32 %v373, %v117
    %v375 = vadd.f32 %v374, %v118
    %v376 = vadd.f32 %v375, %v119
    %v377 = vadd.f32 %v376, %v120
    %v378 = vadd.f32 %v377, %v121
    %v379 = vadd.f32 %v378, %v122
    %v380 = vadd.f32 %v379, %v123
    %v381 = vadd.f32 %v380, %v124
    %v382 = vadd.f32 %v381, %v125
    %v383 = vadd.f32 %v382, %v126
    %v384 = vadd.f32 %v383, %v127
    %v385 = vadd.f32 %v384, %v128
    %v386 = vadd.f32 %v385, %v129
    %v387 = vadd.f32 %v386, %v130
    %v388 = vadd.f32 %v387, %v131
    %v389 = vadd.f32 %v388, %v132
    %v390 = vadd.f32 %v389, %v133
    %v391 = vadd.f32 %v390, %v134
    %v392 = vadd.f32 %v391, %v135
    %v393 = vadd.f32 %v392, %v136
    %v394 = vadd.f32 %v393, %v137
    %v395 = vadd.f32 %v394, %v138
    %v396 = vadd.f32 %v395, %v139
    %v397 = vadd.f32 %v396, %v140
    %v398 = vadd.f32 %v397, %v141
    %v399 = vadd.f32 %v398, %v142
    %v400 = vadd.f32 %v399, %v143
    %v401 = vadd.f32 %v400, %v144
    %v402 = vadd.f32 %v401, %v145
    %403 = vadd.xlane.f32.xlu0 %v402
    %v404 = vpop.xlane.xlu0 %403
    %v405 = vadd.f32 %v146, %v147
    %v406 = vadd.f32 %v405, %v148
    %v407 = vadd.f32 %v406, %v149
    %v408 = vadd.f32 %v407, %v150
    %v409 = vadd.f32 %v408, %v151
    %v410 = vadd.f32 %v409, %v152
    %v411 = vadd.f32 %v410, %v153
    %v412 = vadd.f32 %v411, %v154
    %v413 = vadd.f32 %v412, %v155
    %v414 = vadd.f32 %v413, %v156
    %v415 = vadd.f32 %v414, %v157
    %v416 = vadd.f32 %v415, %v158
    %v417 = vadd.f32 %v416, %v159
    %v418 = vadd.f32 %v417, %v160
    %v419 = vadd.f32 %v418, %v161
    %v420 = vadd.f32 %v419, %v162
    %v421 = vadd.f32 %v420, %v163
    %v422 = vadd.f32 %v421, %v164
    %v423 = vadd.f32 %v422, %v165
    %v424 = vadd.f32 %v423, %v166
    %v425 = vadd.f32 %v424, %v167
    %v426 = vadd.f32 %v425, %v168
    %v427 = vadd.f32 %v426, %v169
    %v428 = vadd.f32 %v427, %v170
    %v429 = vadd.f32 %v428, %v171
    %v430 = vadd.f32 %v429, %v172
    %v431 = vadd.f32 %v430, %v173
    %v432 = vadd.f32 %v431, %v174
    %v433 = vadd.f32 %v432, %v175
    %v434 = vadd.f32 %v433, %v176
    %v435 = vadd.f32 %v434, %v177
    %436 = vadd.xlane.f32.xlu0 %v435
    %v437 = vpop.xlane.xlu0 %436
    %v438 = vadd.f32 %v178, %v179
    %v439 = vadd.f32 %v438, %v180
    %v440 = vadd.f32 %v439, %v181
    %v441 = vadd.f32 %v440, %v182
    %v442 = vadd.f32 %v441, %v183
    %v443 = vadd.f32 %v442, %v184
    %v444 = vadd.f32 %v443, %v185
    %v445 = vadd.f32 %v444, %v186
    %v446 = vadd.f32 %v445, %v187
    %v447 = vadd.f32 %v446, %v188
    %v448 = vadd.f32 %v447, %v189
    %v449 = vadd.f32 %v448, %v190
    %v450 = vadd.f32 %v449, %v191
    %v451 = vadd.f32 %v450, %v192
    %v452 = vadd.f32 %v451, %v193
    %v453 = vadd.f32 %v452, %v194
    %v454 = vadd.f32 %v453, %v195
    %v455 = vadd.f32 %v454, %v196
    %v456 = vadd.f32 %v455, %v197
    %v457 = vadd.f32 %v456, %v198
    %v458 = vadd.f32 %v457, %v199
    %v459 = vadd.f32 %v458, %v200
    %v460 = vadd.f32 %v459, %v201
    %v461 = vadd.f32 %v460, %v202
    %v462 = vadd.f32 %v461, %v203
    %v463 = vadd.f32 %v462, %v204
    %v464 = vadd.f32 %v463, %v205
    %v465 = vadd.f32 %v464, %v206
    %v466 = vadd.f32 %v465, %v207
    %v467 = vadd.f32 %v466, %v208
    %v468 = vadd.f32 %v467, %v209
    %469 = vadd.xlane.f32.xlu0 %v468
    %v470 = vpop.xlane.xlu0 %469
    %v471 = vadd.f32 %v210, %v211
    %v472 = vadd.f32 %v471, %v212
    %v473 = vadd.f32 %v472, %v213
    %v474 = vadd.f32 %v473, %v214
    %v475 = vadd.f32 %v474, %v215
    %v476 = vadd.f32 %v475, %v216
    %v477 = vadd.f32 %v476, %v217
    %v478 = vadd.f32 %v477, %v218
    %v479 = vadd.f32 %v478, %v219
    %v480 = vadd.f32 %v479, %v220
    %v481 = vadd.f32 %v480, %v221
    %v482 = vadd.f32 %v481, %v222
    %v483 = vadd.f32 %v482, %v223
    %v484 = vadd.f32 %v483, %v224
    %v485 = vadd.f32 %v484, %v225
    %v486 = vadd.f32 %v485, %v226
    %v487 = vadd.f32 %v486, %v227
    %v488 = vadd.f32 %v487, %v228
    %v489 = vadd.f32 %v488, %v229
    %v490 = vadd.f32 %v489, %v230
    %v491 = vadd.f32 %v490, %v231
    %v492 = vadd.f32 %v491, %v232
    %v493 = vadd.f32 %v492, %v233
    %v494 = vadd.f32 %v493, %v234
    %v495 = vadd.f32 %v494, %v235
    %v496 = vadd.f32 %v495, %v236
    %v497 = vadd.f32 %v496, %v237
    %v498 = vadd.f32 %v497, %v238
    %v499 = vadd.f32 %v498, %v239
    %v500 = vadd.f32 %v499, %v240
    %v501 = vadd.f32 %v500, %v241
    %502 = vadd.xlane.f32.xlu0 %v501
    %v503 = vpop.xlane.xlu0 %502
    %v504 = vadd.f32 %v242, %v243
    %v505 = vadd.f32 %v504, %v244
    %v506 = vadd.f32 %v505, %v245
    %v507 = vadd.f32 %v506, %v246
    %v508 = vadd.f32 %v507, %v247
    %v509 = vadd.f32 %v508, %v248
    %v510 = vadd.f32 %v509, %v249
    %v511 = vadd.f32 %v510, %v250
    %v512 = vadd.f32 %v511, %v251
    %v513 = vadd.f32 %v512, %v252
    %v514 = vadd.f32 %v513, %v253
    %v515 = vadd.f32 %v514, %v254
    %v516 = vadd.f32 %v515, %v255
    %v517 = vadd.f32 %v516, %v256
    %v518 = vadd.f32 %v517, %v257
    %v519 = vadd.f32 %v518, %v258
    %v520 = vadd.f32 %v519, %v259
    %v521 = vadd.f32 %v520, %v260
    %v522 = vadd.f32 %v521, %v261
    %v523 = vadd.f32 %v522, %v262
    %v524 = vadd.f32 %v523, %v263
    %v525 = vadd.f32 %v524, %v264
    %v526 = vadd.f32 %v525, %v265
    %v527 = vadd.f32 %v526, %v266
    %v528 = vadd.f32 %v527, %v267
    %v529 = vadd.f32 %v528, %v268
    %v530 = vadd.f32 %v529, %v269
    %v531 = vadd.f32 %v530, %v270
    %v532 = vadd.f32 %v531, %v271
    %v533 = vadd.f32 %v532, %v272
    %v534 = vadd.f32 %v533, %v273
    %535 = vadd.xlane.f32.xlu0 %v534
    %v536 = vpop.xlane.xlu0 %535
    %v537 = vadd.f32 %v274, %v275
    %v538 = vadd.f32 %v537, %v276
    %v539 = vadd.f32 %v538, %v277
    %v540 = vadd.f32 %v539, %v278
    %v541 = vadd.f32 %v540, %v279
    %v542 = vadd.f32 %v541, %v280
    %v543 = vadd.f32 %v542, %v281
    %v544 = vadd.f32 %v543, %v282
    %v545 = vadd.f32 %v544, %v283
    %v546 = vadd.f32 %v545, %v284
    %v547 = vadd.f32 %v546, %v285
    %v548 = vadd.f32 %v547, %v286
    %v549 = vadd.f32 %v548, %v287
    %v550 = vadd.f32 %v549, %v288
    %v551 = vadd.f32 %v550, %v289
    %v552 = vadd.f32 %v551, %v290
    %v553 = vadd.f32 %v552, %v291
    %v554 = vadd.f32 %v553, %v292
    %v555 = vadd.f32 %v554, %v293
    %v556 = vadd.f32 %v555, %v294
    %v557 = vadd.f32 %v556, %v295
    %v558 = vadd.f32 %v557, %v296
    %v559 = vadd.f32 %v558, %v297
    %v560 = vadd.f32 %v559, %v298
    %v561 = vadd.f32 %v560, %v299
    %v562 = vadd.f32 %v561, %v300
    %v563 = vadd.f32 %v562, %v301
    %v564 = vadd.f32 %v563, %v302
    %v565 = vadd.f32 %v564, %v303
    %v566 = vadd.f32 %v565, %v304
    %v567 = vadd.f32 %v566, %v305
    %568 = vadd.xlane.f32.xlu0 %v567
    %v569 = vpop.xlane.xlu0 %568
    %v570 = vadd.f32 %v42, %v338
    %v571 = vadd.f32 %v43, %v371
    %v572 = vadd.f32 %v44, %v404
    %v573 = vadd.f32 %v45, %v437
    %v574 = vadd.f32 %v46, %v470
    %v575 = vadd.f32 %v47, %v503
    %v576 = vadd.f32 %v48, %v536
    %v577 = vadd.f32 %v49, %v569
    %vm578 = vcmask 7168
    %579 = vst.msk [vmem:[#allocation2] sm:$0xff] %vm578, %v570
    %580 = vst.msk [vmem:[#allocation2 + $0x8] sm:$0xff] %vm578, %v571
    %581 = vst.msk [vmem:[#allocation2 + $0x10] sm:$0xff] %vm578, %v572
    %582 = vst.msk [vmem:[#allocation2 + $0x18] sm:$0xff] %vm578, %v573
    %583 = vst.msk [vmem:[#allocation2 + $0x20] sm:$0xff] %vm578, %v574
    %584 = vst.msk [vmem:[#allocation2 + $0x28] sm:$0xff] %vm578, %v575
    %585 = vst.msk [vmem:[#allocation2 + $0x30] sm:$0xff] %vm578, %v576
    %586 = vst.msk [vmem:[#allocation2 + $0x38] sm:$0xff] %vm578, %v577
    // Predicated region
    $region22: #{tpu_custom_call.1} parent=1 // pred_check
      %p587 = pneg %p29
    $region23: #{tpu_custom_call.1} parent=1 // pred_check_branch
      %589 = sbr.rel (%p587) target = $region25
    $region24: #{tpu_custom_call.1} parent=1 // pred_region
      %v590 = vld [vmem:[#allocation2] sm:$0xff]
      %v591 = vld [vmem:[#allocation2 + $0x8] sm:$0xff]
      %v592 = vld [vmem:[#allocation2 + $0x10] sm:$0xff]
      %v593 = vld [vmem:[#allocation2 + $0x18] sm:$0xff]
      %v594 = vld [vmem:[#allocation2 + $0x20] sm:$0xff]
      %v595 = vld [vmem:[#allocation2 + $0x28] sm:$0xff]
      %v596 = vld [vmem:[#allocation2 + $0x30] sm:$0xff]
      %v597 = vld [vmem:[#allocation2 + $0x38] sm:$0xff]
      %v598 = vadd.f32 %v590, 0.0
      %v599 = vadd.f32 %v591, 0.0
      %v600 = vadd.f32 %v592, 0.0
      %v601 = vadd.f32 %v593, 0.0
      %v602 = vadd.f32 %v594, 0.0
      %v603 = vadd.f32 %v595, 0.0
      %v604 = vadd.f32 %v596, 0.0
      %v605 = vadd.f32 %v597, 0.0
      %v606 = vmul.f32 %v598, 0.00024414063
      %v607 = vmul.f32 %v599, 0.00024414063
      %v608 = vmul.f32 %v600, 0.00024414063
      %v609 = vmul.f32 %v601, 0.00024414063
      %v610 = vmul.f32 %v602, 0.00024414063
      %v611 = vmul.f32 %v603, 0.00024414063
      %v612 = vmul.f32 %v604, 0.00024414063
      %v613 = vmul.f32 %v605, 0.00024414063
      %v614 = vld [vmem:[%s1] sm:$0x3]
      %v615 = vld [vmem:[%s2] sm:$0x3]
      %v616 = vlaneseq
      %v617 = vshrl.u32 %v616, 7
      %v618 = vsub.s32 0, %v617
      %v619 = vrot.slane %v614, %v618
      %622 = vbcast.lane.b32.xlu0 %v619, 256
      %v623 = vpop.permute.xlu0 %622
      %s625 = sor.u32 256, 8
      %626 = vbcast.lane.b32.xlu0 %v619, %s625
      %v627 = vpop.permute.xlu0 %626
      %s629 = sor.u32 256, 16
      %630 = vbcast.lane.b32.xlu0 %v619, %s629
      %v631 = vpop.permute.xlu0 %630
      %s633 = sor.u32 256, 24
      %634 = vbcast.lane.b32.xlu0 %v619, %s633
      %v635 = vpop.permute.xlu0 %634
      %v640 = vmul.f32 %v606, %v623
      %v641 = vmul.f32 %v607, %v627
      %v642 = vmul.f32 %v608, %v631
      %v643 = vmul.f32 %v609, %v635
      %v644 = vmul.f32 %v610, %v623
      %v645 = vmul.f32 %v611, %v627
      %v646 = vmul.f32 %v612, %v631
      %v647 = vmul.f32 %v613, %v635
      %656 = vset.pattern.permute.xlu0 0
      %657 = vperm.xlu0 %656, %v640
      %v658 = vpop.permute.xlu0 %657
      %659 = vset.pattern.permute.xlu0 0
      %660 = vperm.xlu0 %659, %v641
      %v661 = vpop.permute.xlu0 %660
      %662 = vset.pattern.permute.xlu0 0
      %663 = vperm.xlu0 %662, %v642
      %v664 = vpop.permute.xlu0 %663
      %665 = vset.pattern.permute.xlu0 0
      %666 = vperm.xlu0 %665, %v643
      %v667 = vpop.permute.xlu0 %666
      %668 = vset.pattern.permute.xlu0 0
      %669 = vperm.xlu0 %668, %v644
      %v670 = vpop.permute.xlu0 %669
      %671 = vset.pattern.permute.xlu0 0
      %672 = vperm.xlu0 %671, %v645
      %v673 = vpop.permute.xlu0 %672
      %674 = vset.pattern.permute.xlu0 0
      %675 = vperm.xlu0 %674, %v646
      %v676 = vpop.permute.xlu0 %675
      %677 = vset.pattern.permute.xlu0 0
      %678 = vperm.xlu0 %677, %v647
      %v679 = vpop.permute.xlu0 %678
      %v680 = vlaneseq
      %v681 = vand.u32 %v680, 127
      %v682 = vlaneseq
      %v683 = vshrl.u32 %v682, 7
      %v684 = vsub.s32 %v681, %v683
      %v685 = vrot.slane %v658, %v684
      %v686 = vadd.s32 %v681, 4294967288
      %v687 = vlaneseq
      %v688 = vshrl.u32 %v687, 7
      %v689 = vsub.s32 %v686, %v688
      %v690 = vrot.slane %v661, %v689
      %vm691 = vcmask 130112
      %v692 = vsel %vm691, %v690, %v685
      %v693 = vadd.s32 %v681, 4294967280
      %v694 = vlaneseq
      %v695 = vshrl.u32 %v694, 7
      %v696 = vsub.s32 %v693, %v695
      %v697 = vrot.slane %v664, %v696
      %vm698 = vcmask 195712
      %v699 = vsel %vm698, %v697, %v692
      %v700 = vadd.s32 %v681, 4294967272
      %v701 = vlaneseq
      %v702 = vshrl.u32 %v701, 7
      %v703 = vsub.s32 %v700, %v702
      %v704 = vrot.slane %v667, %v703
      %vm705 = vcmask 261312
      %v706 = vsel %vm705, %v704, %v699
      %v707 = vlaneseq
      %v708 = vshrl.u32 %v707, 7
      %v709 = vsub.s32 %v681, %v708
      %v710 = vrot.slane %v670, %v709
      %v711 = vlaneseq
      %v712 = vshrl.u32 %v711, 7
      %v713 = vsub.s32 %v686, %v712
      %v714 = vrot.slane %v673, %v713
      %v715 = vsel %vm691, %v714, %v710
      %v716 = vlaneseq
      %v717 = vshrl.u32 %v716, 7
      %v718 = vsub.s32 %v693, %v717
      %v719 = vrot.slane %v676, %v718
      %v720 = vsel %vm698, %v719, %v715
      %v721 = vlaneseq
      %v722 = vshrl.u32 %v721, 7
      %v723 = vsub.s32 %v700, %v722
      %v724 = vrot.slane %v679, %v723
      %v725 = vsel %vm705, %v724, %v720
      %vm726 = vcmask 1041409
      %v727 = vsel %vm726, %v725, %v706
      %vm729 = vcmask 254976
      %v730 = vsel %vm729, %v727, 0.0
      %731 = vadd.xlane.f32.xlu0 %v730
      %v732 = vpop.xlane.xlu0 %731
      %v733 = vmax.f32 %v732, 0.0
      %v734 = vlaneseq
      %v735 = vshrl.u32 %v734, 7
      %v736 = vsub.s32 0, %v735
      %v737 = vrot.slane %v615, %v736
      %v738 = vmul.f32 %v733, %v737
      %v739 = vadd.f32 %v738, 0.0
      %v740 = vlaneseq
      %v741 = vshrl.u32 %v740, 7
      %v742 = vsub.s32 1, %v741
      %v743 = vrot.slane %v614, %v742
      %746 = vbcast.lane.b32.xlu0 %v743, 256
      %v747 = vpop.permute.xlu0 %746
      %s749 = sor.u32 256, 8
      %750 = vbcast.lane.b32.xlu0 %v743, %s749
      %v751 = vpop.permute.xlu0 %750
      %s753 = sor.u32 256, 16
      %754 = vbcast.lane.b32.xlu0 %v743, %s753
      %v755 = vpop.permute.xlu0 %754
      %s757 = sor.u32 256, 24
      %758 = vbcast.lane.b32.xlu0 %v743, %s757
      %v759 = vpop.permute.xlu0 %758
      %v764 = vmul.f32 %v606, %v747
      %v765 = vmul.f32 %v607, %v751
      %v766 = vmul.f32 %v608, %v755
      %v767 = vmul.f32 %v609, %v759
      %v768 = vmul.f32 %v610, %v747
      %v769 = vmul.f32 %v611, %v751
      %v770 = vmul.f32 %v612, %v755
      %v771 = vmul.f32 %v613, %v759
      %780 = vset.pattern.permute.xlu0 0
      %781 = vperm.xlu0 %780, %v764
      %v782 = vpop.permute.xlu0 %781
      %783 = vset.pattern.permute.xlu0 0
      %784 = vperm.xlu0 %783, %v765
      %v785 = vpop.permute.xlu0 %784
      %786 = vset.pattern.permute.xlu0 0
      %787 = vperm.xlu0 %786, %v766
      %v788 = vpop.permute.xlu0 %787
      %789 = vset.pattern.permute.xlu0 0
      %790 = vperm.xlu0 %789, %v767
      %v791 = vpop.permute.xlu0 %790
      %792 = vset.pattern.permute.xlu0 0
      %793 = vperm.xlu0 %792, %v768
      %v794 = vpop.permute.xlu0 %793
      %795 = vset.pattern.permute.xlu0 0
      %796 = vperm.xlu0 %795, %v769
      %v797 = vpop.permute.xlu0 %796
      %798 = vset.pattern.permute.xlu0 0
      %799 = vperm.xlu0 %798, %v770
      %v800 = vpop.permute.xlu0 %799
      %801 = vset.pattern.permute.xlu0 0
      %802 = vperm.xlu0 %801, %v771
      %v803 = vpop.permute.xlu0 %802
      %v804 = vlaneseq
      %v805 = vshrl.u32 %v804, 7
      %v806 = vsub.s32 %v681, %v805
      %v807 = vrot.slane %v782, %v806
      %v808 = vlaneseq
      %v809 = vshrl.u32 %v808, 7
      %v810 = vsub.s32 %v686, %v809
      %v811 = vrot.slane %v785, %v810
      %v812 = vsel %vm691, %v811, %v807
      %v813 = vlaneseq
      %v814 = vshrl.u32 %v813, 7
      %v815 = vsub.s32 %v693, %v814
      %v816 = vrot.slane %v788, %v815
      %v817 = vsel %vm698, %v816, %v812
      %v818 = vlaneseq
      %v819 = vshrl.u32 %v818, 7
      %v820 = vsub.s32 %v700, %v819
      %v821 = vrot.slane %v791, %v820
      %v822 = vsel %vm705, %v821, %v817
      %v823 = vlaneseq
      %v824 = vshrl.u32 %v823, 7
      %v825 = vsub.s32 %v681, %v824
      %v826 = vrot.slane %v794, %v825
      %v827 = vlaneseq
      %v828 = vshrl.u32 %v827, 7
      %v829 = vsub.s32 %v686, %v828
      %v830 = vrot.slane %v797, %v829
      %v831 = vsel %vm691, %v830, %v826
      %v832 = vlaneseq
      %v833 = vshrl.u32 %v832, 7
      %v834 = vsub.s32 %v693, %v833
      %v835 = vrot.slane %v800, %v834
      %v836 = vsel %vm698, %v835, %v831
      %v837 = vlaneseq
      %v838 = vshrl.u32 %v837, 7
      %v839 = vsub.s32 %v700, %v838
      %v840 = vrot.slane %v803, %v839
      %v841 = vsel %vm705, %v840, %v836
      %v842 = vsel %vm726, %v841, %v822
      %v844 = vsel %vm729, %v842, 0.0
      %845 = vadd.xlane.f32.xlu0 %v844
      %v846 = vpop.xlane.xlu0 %845
      %v847 = vmax.f32 %v846, 0.0
      %v848 = vlaneseq
      %v849 = vshrl.u32 %v848, 7
      %v850 = vsub.s32 1, %v849
      %v851 = vrot.slane %v615, %v850
      %v852 = vmul.f32 %v847, %v851
      %v853 = vadd.f32 %v739, %v852
      %v854 = vadd.f32 %v853, %v853
      %v855 = vxor.u32 %v854, 2147483648
      %v856 = vmul.f32 %v855, 1.442695
      %v857 = vpow.pop %v856
      %v858 = vadd.f32 %v857, 1.0
      %v859 = vrcp.pop %v858
      %v860 = vmul.f32 1.0, %v859
      %861 = vst.msk [vmem:[#allocation6] sm:$0x3] %vm729, %v860
    $region25: #{tpu_custom_call.1} parent=1 // pred_fallthru
      _
    // Predicated region
    $region26: #{tpu_custom_call.1} parent=1 // pred_check
      _
    $region27: #{tpu_custom_call.1} parent=1 // pred_check_branch
      %863 = sbr.rel (0) target = $region29
    $region28: #{tpu_custom_call.1} parent=1 // pred_region
      %s865 = ssub.s32 32, 32
      %866 = vsyncadd [#allocation5], %s865
      %s868 = sshll.u32 [#allocation6], 4
      %s869 = int_to_ptr.vmem [resolvable:$true] %s868
      %871 = dma.vmem_to_hbm [thread:$0]  %s869, 32, %s3, [#allocation5]
    $region29: #{tpu_custom_call.1} parent=1 // pred_fallthru
      _
    // Predicated region
    $region30: #{tpu_custom_call.1} parent=1 // pred_check
      _
    $region31: #{tpu_custom_call.1} parent=1 // pred_check_branch
      %873 = sbr.rel (0) target = $region33
    $region32: #{tpu_custom_call.1} parent=1 // pred_region
      %874 = dma.done [#allocation5], 32
    $region33: #{tpu_custom_call.1} parent=1 // pred_fallthru
      _
    %875 = vsyncpa [#allocation4], 1
    %876 = vsyncpa [#allocation5], 1

</llo_original>
